<compile_context>
chip_gen: v7x
topology: tpu7x:2x2x1
jax: 0.10.0
libtpu: 0.0.40
codegen_flags: <defaults>
</compile_context>

<pallas_src>
import functools
import math

import jax
import jax.numpy as jnp
from jax.experimental import pallas as pl
from jax.experimental.pallas import tpu as pltpu

MASK_VAL = -9e15


def _mxu_dot(a, b):
    """MXU-friendly matmul: bf16 inputs, f32 accumulation."""
    return jnp.dot(a.astype(jnp.bfloat16), b.astype(jnp.bfloat16),
                   preferred_element_type=jnp.float32)


def _round_up(n, m):
    return ((n + m - 1) // m) * m


def _pick_tile(n_pad, preferred):
    """Largest multiple of 128 dividing n_pad that is <= preferred (>= 128)."""
    preferred = max(128, preferred)
    best = 128
    for t in range(128, n_pad + 1, 128):
        if n_pad % t == 0 and t <= preferred:
            best = t
    return best


def _vmem_cap_bytes():
    try:
        return int(getattr(pltpu.get_tpu_info(), "vmem_capacity_bytes", 64 << 20))
    except Exception:
        return 64 << 20


# --------------------------------------------------------------------------
# Kernel 1: projection  wh = x @ W (bf16 store) ;  scores = wh @ [a_src a_dst 0..]
# --------------------------------------------------------------------------
def gat_project_kernel(x_ref, w_ref, a_ref, wh_ref, s_ref):
    wh = _mxu_dot(x_ref[...], w_ref[...])           # (tile_n, F_out) f32 acc
    wh_ref[...] = wh.astype(wh_ref.dtype)           # bf16 store
    s_ref[...] = _mxu_dot(wh, a_ref[...])           # (tile_n, 128) lane-dense


# --------------------------------------------------------------------------
# Kernel 2: masked attention, online softmax, empty-tile skipping
# --------------------------------------------------------------------------
def gat_attn_kernel(flags_ref, esrc_ref, edst_ref, adj_ref, wh_ref, out_ref,
                    m_sc, l_sc, acc_sc, *, alpha, apply_elu, apply_relu):
    qi = pl.program_id(0)
    ki = pl.program_id(1)

    @pl.when(ki == 0)
    def _():
        m_sc[...] = jnp.full_like(m_sc, -jnp.inf)
        l_sc[...] = jnp.zeros_like(l_sc)
        acc_sc[...] = jnp.zeros_like(acc_sc)

    # Skip all-zero adjacency tiles (flag computed in wrapper; q-rows with no
    # edges anywhere fall back to processing all tiles -> pyGAT's uniform
    # attention fallback is preserved and l never ends up 0).
    @pl.when(flags_ref[qi, ki] != 0)
    def _():
        e = esrc_ref[...] + edst_ref[...]                     # (tq,1)+(1,tk)
        e = jnp.where(e > 0, e, alpha * e)                    # LeakyReLU(0.2)
        masked = jnp.where(adj_ref[...] > 0, e, MASK_VAL)     # adjacency mask

        m_prev = m_sc[...]
        m_new = jnp.maximum(m_prev, jnp.max(masked, axis=1, keepdims=True))
        scale = jnp.exp(m_prev - m_new)                       # exp(-inf)=0 at init
        p = jnp.exp(masked - m_new)                           # unnormalized probs

        l_sc[...] = scale * l_sc[...] + jnp.sum(p, axis=1, keepdims=True)
        acc_sc[...] = scale * acc_sc[...] + jnp.dot(
            p.astype(jnp.bfloat16), wh_ref[...],
            preferred_element_type=jnp.float32)
        m_sc[...] = m_new

    @pl.when(ki == pl.num_programs(1) - 1)
    def _():
        h = acc_sc[...] * pl.reciprocal(l_sc[...], approx=True)   # EUP slot
        if apply_elu:                                             # concat=True -> ELU
            h = jnp.where(h > 0, h, jnp.expm1(h))
        if apply_relu:                                            # F.relu in GAT.forward
            h = jnp.maximum(h, 0.0)
        out_ref[...] = h.astype(out_ref.dtype)


# --------------------------------------------------------------------------
# One GraphAttentionLayer (inputs already padded to a multiple of 128 rows)
# --------------------------------------------------------------------------
def gat_layer(x, adj_i8, w, a, *, alpha=0.2, apply_elu=True, apply_relu=False,
              out_dtype=jnp.float32, tile_q=512, tile_k=1024):
    n_pad, f_in = x.shape
    f_out = w.shape[1]

    # Combined src/dst attention vectors, padded to 128 lanes so the score
    # output stores are full (unmasked) lane-dense writes.
    a_cat = jnp.concatenate([a[:f_out], a[f_out:]], axis=1)       # (F_out, 2)
    a_pad = jnp.pad(a_cat, ((0, 0), (0, 126)))                    # (F_out, 128)

    # --- projection --------------------------------------------------------
    tile_n = _pick_tile(n_pad, 512)
    wh, scores = pl.pallas_call(
        gat_project_kernel,
        out_shape=(jax.ShapeDtypeStruct((n_pad, f_out), jnp.bfloat16),
                   jax.ShapeDtypeStruct((n_pad, 128), jnp.float32)),
        grid=(n_pad // tile_n,),
        in_specs=[pl.BlockSpec((tile_n, f_in), lambda i: (i, 0)),
                  pl.BlockSpec((f_in, f_out), lambda i: (0, 0)),
                  pl.BlockSpec((f_out, 128), lambda i: (0, 0))],
        out_specs=(pl.BlockSpec((tile_n, f_out), lambda i: (i, 0)),
                   pl.BlockSpec((tile_n, 128), lambda i: (i, 0))),
        compiler_params=pltpu.CompilerParams(
            dimension_semantics=("parallel",)),
    )(x, w, a_pad)

    e_src = scores[:, 0:1]                    # (N, 1) column
    e_dst = scores[:, 1].reshape(1, n_pad)    # (1, N) lane-aligned row

    # --- tile selection (keep >= 2 q blocks so v7x megacore can split) -----
    tq_pref = tile_q if n_pad < 256 else min(tile_q, n_pad // 2)
    tq = _pick_tile(n_pad, tq_pref)
    tk = _pick_tile(n_pad, tile_k)
    nq, nk = n_pad // tq, n_pad // tk

    # Per-(qi,ki) nonzero flags for empty-tile skipping; q-row-tiles with no
    # edges at all keep every k-tile so the softmax denominator stays > 0.
    tile_nz = (adj_i8 > 0).reshape(nq, tq, nk, tk).any(axis=(1, 3))
    row_has = tile_nz.any(axis=1, keepdims=True)
    flags = (tile_nz | ~row_has).astype(jnp.int32)

    # --- generation-aware VMEM budget --------------------------------------
    out_itemsize = jnp.dtype(out_dtype).itemsize
    working_set = (2 * tq * tk * 1                  # adj int8 tiles (dbl-buf)
                   + 2 * tk * f_out * 2             # wh bf16 tiles
                   + 2 * (tq + tk) * 4              # e_src / e_dst tiles
                   + 2 * tq * f_out * out_itemsize  # out tile
                   + tq * (f_out + 2) * 4           # scratch accumulators
                   + 3 * tq * tk * 4                # e / masked / p f32 temps
                   + tq * tk * 2)                   # p bf16 cast temp
    cap = _vmem_cap_bytes()
    vmem_bytes = max(2 * working_set + (4 << 20), 32 << 20)
    vmem_bytes = max(min(vmem_bytes, cap - (8 << 20)), 16 << 20)

    kernel = functools.partial(gat_attn_kernel, alpha=alpha,
                               apply_elu=apply_elu, apply_relu=apply_relu)
    return pl.pallas_call(
        kernel,
        out_shape=jax.ShapeDtypeStruct((n_pad, f_out), out_dtype),
        grid_spec=pltpu.PrefetchScalarGridSpec(
            num_scalar_prefetch=1,
            grid=(nq, nk),
            in_specs=[pl.BlockSpec((tq, 1), lambda qi, ki, flags: (qi, 0)),
                      pl.BlockSpec((1, tk), lambda qi, ki, flags: (0, ki)),
                      pl.BlockSpec((tq, tk), lambda qi, ki, flags: (qi, ki)),
                      pl.BlockSpec((tk, f_out), lambda qi, ki, flags: (ki, 0))],
            out_specs=pl.BlockSpec((tq, f_out), lambda qi, ki, flags: (qi, 0)),
            scratch_shapes=[pltpu.VMEM((tq, 1), jnp.float32),
                            pltpu.VMEM((tq, 1), jnp.float32),
                            pltpu.VMEM((tq, f_out), jnp.float32)]),
        compiler_params=pltpu.CompilerParams(
            dimension_semantics=("parallel", "arbitrary"),
            vmem_limit_bytes=int(vmem_bytes)),
    )(flags, e_src, e_dst, adj_i8, wh)


def gat_forward(x, adj, w1, a1, w2, a2, *, tile_q=512, tile_k=1024):
    """GAT.forward: x = relu(gc1(x, adj)); x = gc2(x, adj)."""
    n = x.shape[0]
    n_pad = _round_up(n, 128)
    if n_pad != n:
        # Padded rows/cols of adj are zero -> their exp underflows to 0 for
        # every real row; padded output rows are sliced off at the end.
        x = jnp.pad(x, ((0, n_pad - n), (0, 0)))
        adj = jnp.pad(adj, ((0, n_pad - n), (0, n_pad - n)))
    adj_i8 = (adj > 0).astype(jnp.int8)      # mask-only adjacency, 4x fewer bytes
    # TODO(synk): F.dropout is identity in eval mode; omitted here.
    h = gat_layer(x, adj_i8, w1, a1, alpha=0.2, apply_elu=True, apply_relu=True,
                  out_dtype=jnp.bfloat16, tile_q=tile_q, tile_k=tile_k)
    out = gat_layer(h, adj_i8, w2, a2, alpha=0.2, apply_elu=True, apply_relu=False,
                    out_dtype=jnp.float32, tile_q=tile_q, tile_k=tile_k)
    return out[:n]


# --------------------------------------------------------------------------
# Pure-JAX reference (mirrors the PyTorch math; matmul_dtype=bf16 mirrors the
# MXU input precision of the kernel, f32 gives the exact PyTorch-f32 math).
# --------------------------------------------------------------------------
def gat_reference(x, adj, w1, a1, w2, a2, matmul_dtype=jnp.bfloat16):
    def mm(a, b):
        return jnp.dot(a.astype(matmul_dtype), b.astype(matmul_dtype),
                       preferred_element_type=jnp.float32)

    def layer(h, w, a, relu):
        f = w.shape[1]
        wh = mm(h, w)
        s = mm(wh, jnp.concatenate([a[:f], a[f:]], axis=1))
        e = s[:, 0:1] + s[:, 1][None, :]
        e = jnp.where(e > 0, e, 0.2 * e)
        masked = jnp.where(adj > 0, e, MASK_VAL)
        m = jnp.max(masked, axis=1, keepdims=True)
        p = jnp.exp(masked - m)
        hp = mm(p, wh) / jnp.sum(p, axis=1, keepdims=True)
        hp = jnp.where(hp > 0, hp, jnp.expm1(hp))             # ELU (concat=True)
        return jnp.maximum(hp, 0.0) if relu else hp

    return layer(layer(x, w1, a1, True), w2, a2, False)


def xavier_uniform(key, shape, gain):
    fan_in, fan_out = shape[0], shape[1]
    bound = gain * math.sqrt(6.0 / (fan_in + fan_out))
    return jax.random.uniform(key, shape, jnp.float32, -bound, bound)


if __name__ == "__main__":
    # N=300 exercises the pad-to-128 path; tile_q=tile_k=128 exercises the
    # multi-tile online-softmax path.  Real graphs use the 512/1024 defaults.
    N, nfeat, nhid, nout = 300, 64, 128, 128
    key = jax.random.PRNGKey(0)
    kx, kadj, kw1, ka1, kw2, ka2 = jax.random.split(key, 6)

    x = jax.random.normal(kx, (N, nfeat), jnp.float32)
    adj = (jax.random.uniform(kadj, (N, N)) > 0.9).astype(jnp.float32)
    adj = adj.at[0:128, 128:256].set(0.0)            # force an all-zero tile
    adj = jnp.maximum(adj, jnp.eye(N, dtype=jnp.float32))     # self-loops

    gain = 1.414
    w1 = xavier_uniform(kw1, (nfeat, nhid), gain)
    a1 = xavier_uniform(ka1, (2 * nhid, 1), gain)
    w2 = xavier_uniform(kw2, (nhid, nout), gain)
    a2 = xavier_uniform(ka2, (2 * nout, 1), gain)

    out = gat_forward(x, adj, w1, a1, w2, a2, tile_q=128, tile_k=128)
    jax.block_until_ready(out)

    ref_bf16 = gat_reference(x, adj, w1, a1, w2, a2, jnp.bfloat16)
    ref_f32 = gat_reference(x, adj, w1, a1, w2, a2, jnp.float32)
    assert out.shape == (N, nout)
    assert jnp.allclose(out, ref_bf16, atol=5e-2, rtol=5e-2)   # same MXU precision
    assert jnp.allclose(out, ref_f32, atol=1.5e-1, rtol=1.5e-1)  # vs pure f32 math
    print("KERNEL_OK")
</pallas_src>

<mosaic_0001>
module attributes {stable_mosaic.version = 11 : i64} {
  func.func @gat_project_kernel(%arg0: i32, %arg1: memref<384x64xf32, #tpu.memory_space<vmem>>, %arg2: memref<64x128xf32, #tpu.memory_space<vmem>>, %arg3: memref<128x128xf32, #tpu.memory_space<vmem>>, %arg4: memref<384x128xbf16, #tpu.memory_space<vmem>>, %arg5: memref<384x128xf32, #tpu.memory_space<vmem>>) attributes {dimension_semantics = [#tpu.dimension_semantics<parallel>], iteration_bounds = array<i64: 1>, scalar_prefetch = 0 : i64, scratch_operands = 0 : i64, tpu.core_type = #tpu.core_type<tc>, window_params = [{transform_indices = @transform_0, window_bounds = array<i64: 384, 64>}, {pipeline_mode = #tpu.pipeline_mode<synchronous>, transform_indices = @transform_1, window_bounds = array<i64: 64, 128>}, {pipeline_mode = #tpu.pipeline_mode<synchronous>, transform_indices = @transform_2, window_bounds = array<i64: 128, 128>}, {transform_indices = @transform_3, window_bounds = array<i64: 384, 128>}, {transform_indices = @transform_4, window_bounds = array<i64: 384, 128>}]} {
    %c0 = arith.constant 0 : index
    %c0_0 = arith.constant 0 : index
    %0 = vector.load %arg1[%c0, %c0_0] : memref<384x64xf32, #tpu.memory_space<vmem>>, vector<384x64xf32>
    %c0_1 = arith.constant 0 : index
    %c0_2 = arith.constant 0 : index
    %1 = vector.load %arg2[%c0_1, %c0_2] : memref<64x128xf32, #tpu.memory_space<vmem>>, vector<64x128xf32>
    %2 = arith.truncf %0 : vector<384x64xf32> to vector<384x64xbf16>
    %3 = arith.truncf %1 : vector<64x128xf32> to vector<64x128xbf16>
    %cst = arith.constant dense<0.000000e+00> : vector<384x128xf32>
    %4 = tpu.matmul %2, %3, %cst {dimension_numbers = #tpu.dot_dimension_numbers<[1], [0], [0], [1], [0, 0, 1, 1], [], []>} : vector<384x64xbf16>, vector<64x128xbf16>, vector<384x128xf32> -> vector<384x128xf32>
    %5 = arith.truncf %4 : vector<384x128xf32> to vector<384x128xbf16>
    %c0_3 = arith.constant 0 : index
    %c0_4 = arith.constant 0 : index
    %6 = vector.load %arg4[%c0_3, %c0_4] : memref<384x128xbf16, #tpu.memory_space<vmem>>, vector<384x128xbf16>
    tpu.vector_store %arg4[%c0_3, %c0_4], %5 {strides = array<i32>} : memref<384x128xbf16, #tpu.memory_space<vmem>>, vector<384x128xbf16>,
    %c0_5 = arith.constant 0 : index
    %c0_6 = arith.constant 0 : index
    %7 = vector.load %arg3[%c0_5, %c0_6] : memref<128x128xf32, #tpu.memory_space<vmem>>, vector<128x128xf32>
    %8 = arith.truncf %4 : vector<384x128xf32> to vector<384x128xbf16>
    %9 = arith.truncf %7 : vector<128x128xf32> to vector<128x128xbf16>
    %cst_7 = arith.constant dense<0.000000e+00> : vector<384x128xf32>
    %10 = tpu.matmul %8, %9, %cst_7 {dimension_numbers = #tpu.dot_dimension_numbers<[1], [0], [0], [1], [0, 0, 1, 1], [], []>} : vector<384x128xbf16>, vector<128x128xbf16>, vector<384x128xf32> -> vector<384x128xf32>
    %c0_8 = arith.constant 0 : index
    %c0_9 = arith.constant 0 : index
    %11 = vector.load %arg5[%c0_8, %c0_9] : memref<384x128xf32, #tpu.memory_space<vmem>>, vector<384x128xf32>
    tpu.vector_store %arg5[%c0_8, %c0_9], %10 {strides = array<i32>} : memref<384x128xf32, #tpu.memory_space<vmem>>, vector<384x128xf32>,
    return
  }
  func.func @transform_0(%arg0: i32) -> (i32, i32) {
    %c0_i32 = arith.constant 0 : i32
    %c0_i32_0 = arith.constant 0 : i32
    return %arg0, %c0_i32 : i32, i32
  }
  func.func @transform_1(%arg0: i32) -> (i32, i32) {
    %c0_i32 = arith.constant 0 : i32
    %c0_i32_0 = arith.constant 0 : i32
    %c0_i32_1 = arith.constant 0 : i32
    return %c0_i32, %c0_i32_0 : i32, i32
  }
  func.func @transform_2(%arg0: i32) -> (i32, i32) {
    %c0_i32 = arith.constant 0 : i32
    %c0_i32_0 = arith.constant 0 : i32
    %c0_i32_1 = arith.constant 0 : i32
    return %c0_i32, %c0_i32_0 : i32, i32
  }
  func.func @transform_3(%arg0: i32) -> (i32, i32) {
    %c0_i32 = arith.constant 0 : i32
    %c0_i32_0 = arith.constant 0 : i32
    return %arg0, %c0_i32 : i32, i32
  }
  func.func @transform_4(%arg0: i32) -> (i32, i32) {
    %c0_i32 = arith.constant 0 : i32
    %c0_i32_0 = arith.constant 0 : i32
    return %arg0, %c0_i32 : i32, i32
  }
}

</mosaic_0001>

<llo_original>
// kernel: tpu_custom_call.1
$region0: #{tpu_custom_call.1}
  #allocation0 [shape = 'u32[]', space=smem, size = 0x4, offset = 0x4, fixed_abs, tag = 'smem constant byte address 0x4 - core index']
  #allocation1 [shape = 'u32[144,128]{1,0:T(1,128)}', space=vmem, size = 0x12000, scoped, tag = 'internal scratch']
  %s0 = inlined_call_operand.vmem [shape: f32[384,64], index: 0, kind: input, shape index: {}]
  %s1 = inlined_call_operand.vmem [shape: f32[64,128], index: 1, kind: input, shape index: {}]
  %s2 = inlined_call_operand.vmem [shape: f32[128,128], index: 2, kind: input, shape index: {}]
  %s3 = inlined_call_operand.hbm [shape: bf16[384,128], index: 3, kind: output, shape index: {0}]
  %s4 = inlined_call_operand.hbm [shape: f32[384,128], index: 4, kind: output, shape index: {1}]
  %5 = xla_tuple %s3, %s4
  %s6 = sld [smem:[#allocation0]]
  $region30: #{tpu_custom_call.1} parent=0
    _
  %s8 = ssub.s32 1, %s6
  %s9 = scalar_select 0, %s8, %s6
  $region1: #{tpu_custom_call.1} parent=0
    #allocation2 [shape = 'u8[98304]{0}', space=vmem, size = 0x18000, scoped, tag = 'output window, operand 0, single buffered']
    #allocation3 [shape = 's32[1]{0}', space=sflag, size = 0x4, scoped, tag = 'scoped memory for tpu_custom_call.1']
    #allocation4 [shape = 'u8[196608]{0}', space=vmem, size = 0x30000, scoped, tag = 'output window, operand 1, single buffered']
    #allocation5 [shape = 's32[1]{0}', space=sflag, size = 0x4, scoped, tag = 'scoped memory for tpu_custom_call.1']
    %10 = vsyncpa [#allocation3], 0
    %11 = vsyncpa [#allocation5], 0
    // Predicated region
    $region2: #{tpu_custom_call.1} parent=1 // pred_check
      _
    $region3: #{tpu_custom_call.1} parent=1 // pred_check_branch
      %13 = sbr.rel (0) target = $region5
    $region4: #{tpu_custom_call.1} parent=1 // pred_region
      _
    $region5: #{tpu_custom_call.1} parent=1 // pred_fallthru
      _
    // Predicated region
    $region6: #{tpu_custom_call.1} parent=1 // pred_check
      _
    $region7: #{tpu_custom_call.1} parent=1 // pred_check_branch
      %15 = sbr.rel (0) target = $region9
    $region8: #{tpu_custom_call.1} parent=1 // pred_region
      _
    $region9: #{tpu_custom_call.1} parent=1 // pred_fallthru
      _
    // Predicated region
    $region10: #{tpu_custom_call.1} parent=1 // pred_check
      _
    $region11: #{tpu_custom_call.1} parent=1 // pred_check_branch
      %17 = sbr.rel (0) target = $region13
    $region12: #{tpu_custom_call.1} parent=1 // pred_region
      _
    $region13: #{tpu_custom_call.1} parent=1 // pred_fallthru
      _
    %v19 = vld [vmem:[%s0] sm:$0xff]
    %v20 = vld [vmem:[%s0 + $0x8] sm:$0xff]
    %v21 = vld [vmem:[%s0 + $0x10] sm:$0xff]
    %v22 = vld [vmem:[%s0 + $0x18] sm:$0xff]
    %v23 = vld [vmem:[%s0 + $0x20] sm:$0xff]
    %v24 = vld [vmem:[%s0 + $0x28] sm:$0xff]
    %v25 = vld [vmem:[%s0 + $0x30] sm:$0xff]
    %v26 = vld [vmem:[%s0 + $0x38] sm:$0xff]
    %v27 = vld [vmem:[%s0 + $0x40] sm:$0xff]
    %v28 = vld [vmem:[%s0 + $0x48] sm:$0xff]
    %v29 = vld [vmem:[%s0 + $0x50] sm:$0xff]
    %v30 = vld [vmem:[%s0 + $0x58] sm:$0xff]
    %v31 = vld [vmem:[%s0 + $0x60] sm:$0xff]
    %v32 = vld [vmem:[%s0 + $0x68] sm:$0xff]
    %v33 = vld [vmem:[%s0 + $0x70] sm:$0xff]
    %v34 = vld [vmem:[%s0 + $0x78] sm:$0xff]
    %v35 = vld [vmem:[%s0 + $0x80] sm:$0xff]
    %v36 = vld [vmem:[%s0 + $0x88] sm:$0xff]
    %v37 = vld [vmem:[%s0 + $0x90] sm:$0xff]
    %v38 = vld [vmem:[%s0 + $0x98] sm:$0xff]
    %v39 = vld [vmem:[%s0 + $0xa0] sm:$0xff]
    %v40 = vld [vmem:[%s0 + $0xa8] sm:$0xff]
    %v41 = vld [vmem:[%s0 + $0xb0] sm:$0xff]
    %v42 = vld [vmem:[%s0 + $0xb8] sm:$0xff]
    %v43 = vld [vmem:[%s0 + $0xc0] sm:$0xff]
    %v44 = vld [vmem:[%s0 + $0xc8] sm:$0xff]
    %v45 = vld [vmem:[%s0 + $0xd0] sm:$0xff]
    %v46 = vld [vmem:[%s0 + $0xd8] sm:$0xff]
    %v47 = vld [vmem:[%s0 + $0xe0] sm:$0xff]
    %v48 = vld [vmem:[%s0 + $0xe8] sm:$0xff]
    %v49 = vld [vmem:[%s0 + $0xf0] sm:$0xff]
    %v50 = vld [vmem:[%s0 + $0xf8] sm:$0xff]
    %v51 = vld [vmem:[%s0 + $0x100] sm:$0xff]
    %v52 = vld [vmem:[%s0 + $0x108] sm:$0xff]
    %v53 = vld [vmem:[%s0 + $0x110] sm:$0xff]
    %v54 = vld [vmem:[%s0 + $0x118] sm:$0xff]
    %v55 = vld [vmem:[%s0 + $0x120] sm:$0xff]
    %v56 = vld [vmem:[%s0 + $0x128] sm:$0xff]
    %v57 = vld [vmem:[%s0 + $0x130] sm:$0xff]
    %v58 = vld [vmem:[%s0 + $0x138] sm:$0xff]
    %v59 = vld [vmem:[%s0 + $0x140] sm:$0xff]
    %v60 = vld [vmem:[%s0 + $0x148] sm:$0xff]
    %v61 = vld [vmem:[%s0 + $0x150] sm:$0xff]
    %v62 = vld [vmem:[%s0 + $0x158] sm:$0xff]
    %v63 = vld [vmem:[%s0 + $0x160] sm:$0xff]
    %v64 = vld [vmem:[%s0 + $0x168] sm:$0xff]
    %v65 = vld [vmem:[%s0 + $0x170] sm:$0xff]
    %v66 = vld [vmem:[%s0 + $0x178] sm:$0xff]
    %v67 = vld [vmem:[%s1] sm:$0xff]
    %v68 = vld [vmem:[%s1 + $0x8] sm:$0xff]
    %v69 = vld [vmem:[%s1 + $0x10] sm:$0xff]
    %v70 = vld [vmem:[%s1 + $0x18] sm:$0xff]
    %v71 = vld [vmem:[%s1 + $0x20] sm:$0xff]
    %v72 = vld [vmem:[%s1 + $0x28] sm:$0xff]
    %v73 = vld [vmem:[%s1 + $0x30] sm:$0xff]
    %v74 = vld [vmem:[%s1 + $0x38] sm:$0xff]
    %v75 = vpack.c.bf16 %v20, %v19
    %v76 = vpack.c.bf16 %v22, %v21
    %v77 = vpack.c.bf16 %v24, %v23
    %v78 = vpack.c.bf16 %v26, %v25
    %v79 = vpack.c.bf16 %v28, %v27
    %v80 = vpack.c.bf16 %v30, %v29
    %v81 = vpack.c.bf16 %v32, %v31
    %v82 = vpack.c.bf16 %v34, %v33
    %v83 = vpack.c.bf16 %v36, %v35
    %v84 = vpack.c.bf16 %v38, %v37
    %v85 = vpack.c.bf16 %v40, %v39
    %v86 = vpack.c.bf16 %v42, %v41
    %v87 = vpack.c.bf16 %v44, %v43
    %v88 = vpack.c.bf16 %v46, %v45
    %v89 = vpack.c.bf16 %v48, %v47
    %v90 = vpack.c.bf16 %v50, %v49
    %v91 = vpack.c.bf16 %v52, %v51
    %v92 = vpack.c.bf16 %v54, %v53
    %v93 = vpack.c.bf16 %v56, %v55
    %v94 = vpack.c.bf16 %v58, %v57
    %v95 = vpack.c.bf16 %v60, %v59
    %v96 = vpack.c.bf16 %v62, %v61
    %v97 = vpack.c.bf16 %v64, %v63
    %v98 = vpack.c.bf16 %v66, %v65
    %v99 = vpack.c.bf16 %v68, %v67
    %v100 = vpack.c.bf16 %v70, %v69
    %v101 = vpack.c.bf16 %v72, %v71
    %v102 = vpack.c.bf16 %v74, %v73
    %vm103 = vcmask 523264
    %v105 = vsel %vm103, %v75, 0
    %v108 = vsel %vm103, %v76, 0
    %v111 = vsel %vm103, %v77, 0
    %v114 = vsel %vm103, %v78, 0
    %v117 = vsel %vm103, %v79, 0
    %v120 = vsel %vm103, %v80, 0
    %v123 = vsel %vm103, %v81, 0
    %v126 = vsel %vm103, %v82, 0
    %v129 = vsel %vm103, %v83, 0
    %v132 = vsel %vm103, %v84, 0
    %v135 = vsel %vm103, %v85, 0
    %v138 = vsel %vm103, %v86, 0
    %v141 = vsel %vm103, %v87, 0
    %v144 = vsel %vm103, %v88, 0
    %v147 = vsel %vm103, %v89, 0
    %v150 = vsel %vm103, %v90, 0
    %v153 = vsel %vm103, %v91, 0
    %v156 = vsel %vm103, %v92, 0
    %v159 = vsel %vm103, %v93, 0
    %v162 = vsel %vm103, %v94, 0
    %v165 = vsel %vm103, %v95, 0
    %v168 = vsel %vm103, %v96, 0
    %v171 = vsel %vm103, %v97, 0
    %v174 = vsel %vm103, %v98, 0
    %176 = vmatprep.subr.bf16.mxu0 0
    %177 = vmatpush1.bf16.msra.mxu0 %v99
    %178 = vmatprep.subr.bf16.mxu0 0
    %179 = vmatpush1.bf16.msra.mxu0 %v100
    %180 = vmatprep.subr.bf16.mxu0 0
    %181 = vmatpush1.bf16.msra.mxu0 %v101
    %182 = vmatprep.subr.bf16.mxu0 0
    %183 = vmatpush1.bf16.msra.mxu0 %v102
    %184 = vmatprep.subr.bf16.mxu0 0
    %185 = vmatpush1.bf16.msra.mxu0 0
    %186 = vmatprep.subr.bf16.mxu0 0
    %187 = vmatpush1.bf16.msra.mxu0 0
    %188 = vmatprep.subr.bf16.mxu0 0
    %189 = vmatpush1.bf16.msra.mxu0 0
    %190 = vmatprep.subr.bf16.mxu0 0
    %191 = vmatpush1.bf16.msra.mxu0 0
    %192 = vmatprep.subr.bf16.mxu0 0
    %193 = vmatpush1.bf16.msra.mxu0 0
    %194 = vmatprep.subr.bf16.mxu0 0
    %195 = vmatpush1.bf16.msra.mxu0 0
    %196 = vmatprep.subr.bf16.mxu0 0
    %197 = vmatpush1.bf16.msra.mxu0 0
    %198 = vmatprep.subr.bf16.mxu0 0
    %199 = vmatpush1.bf16.msra.mxu0 0
    %200 = vmatprep.subr.bf16.mxu0 0
    %201 = vmatpush1.bf16.msra.mxu0 0
    %202 = vmatprep.subr.bf16.mxu0 0
    %203 = vmatpush1.bf16.msra.mxu0 0
    %204 = vmatprep.subr.bf16.mxu0 0
    %205 = vmatpush1.bf16.msra.mxu0 0
    %206 = vmatprep.subr.bf16.mxu0 0
    %207 = vmatpush1.bf16.msra.mxu0 0
    %208 = vmatprep.mubr.bf16.mxu0 0
    %209 = vmatmul.mubr.bf16.gmra.mrb[0].mxu0 %v105
    %v210 = vpop.f32.mrb[0].mxu0
    %v211 = vadd.f32 0.0, %v210
    %v212 = vpop.f32.mrb[0].mxu0
    %v213 = vpop.f32.mrb[0].mxu0
    %v214 = vadd.f32 0.0, %v213
    %v215 = vpop.f32.mrb[0].mxu0
    %216 = vmatprep.mubr.bf16.mxu0 0
    %217 = vmatmul.mubr.bf16.gmra.mrb[0].mxu0 %v108
    %v218 = vpop.f32.mrb[0].mxu0
    %v219 = vadd.f32 0.0, %v218
    %v220 = vpop.f32.mrb[0].mxu0
    %v221 = vpop.f32.mrb[0].mxu0
    %v222 = vadd.f32 0.0, %v221
    %v223 = vpop.f32.mrb[0].mxu0
    %224 = vmatprep.mubr.bf16.mxu0 0
    %225 = vmatmul.mubr.bf16.gmra.mrb[0].mxu0 %v111
    %v226 = vpop.f32.mrb[0].mxu0
    %v227 = vadd.f32 0.0, %v226
    %v228 = vpop.f32.mrb[0].mxu0
    %v229 = vpop.f32.mrb[0].mxu0
    %v230 = vadd.f32 0.0, %v229
    %v231 = vpop.f32.mrb[0].mxu0
    %232 = vmatprep.mubr.bf16.mxu0 0
    %233 = vmatmul.mubr.bf16.gmra.mrb[0].mxu0 %v114
    %v234 = vpop.f32.mrb[0].mxu0
    %v235 = vadd.f32 0.0, %v234
    %v236 = vpop.f32.mrb[0].mxu0
    %v237 = vpop.f32.mrb[0].mxu0
    %v238 = vadd.f32 0.0, %v237
    %v239 = vpop.f32.mrb[0].mxu0
    %240 = vmatprep.mubr.bf16.mxu0 0
    %241 = vmatmul.mubr.bf16.gmra.mrb[0].mxu0 %v117
    %v242 = vpop.f32.mrb[0].mxu0
    %v243 = vadd.f32 0.0, %v242
    %v244 = vpop.f32.mrb[0].mxu0
    %v245 = vpop.f32.mrb[0].mxu0
    %v246 = vadd.f32 0.0, %v245
    %v247 = vpop.f32.mrb[0].mxu0
    %248 = vmatprep.mubr.bf16.mxu0 0
    %249 = vmatmul.mubr.bf16.gmra.mrb[0].mxu0 %v120
    %v250 = vpop.f32.mrb[0].mxu0
    %v251 = vadd.f32 0.0, %v250
    %v252 = vpop.f32.mrb[0].mxu0
    %v253 = vpop.f32.mrb[0].mxu0
    %v254 = vadd.f32 0.0, %v253
    %v255 = vpop.f32.mrb[0].mxu0
    %256 = vmatprep.mubr.bf16.mxu0 0
    %257 = vmatmul.mubr.bf16.gmra.mrb[0].mxu0 %v123
    %v258 = vpop.f32.mrb[0].mxu0
    %v259 = vadd.f32 0.0, %v258
    %v260 = vpop.f32.mrb[0].mxu0
    %v261 = vpop.f32.mrb[0].mxu0
    %v262 = vadd.f32 0.0, %v261
    %v263 = vpop.f32.mrb[0].mxu0
    %264 = vmatprep.mubr.bf16.mxu0 0
    %265 = vmatmul.mubr.bf16.gmra.mrb[0].mxu0 %v126
    %v266 = vpop.f32.mrb[0].mxu0
    %v267 = vadd.f32 0.0, %v266
    %v268 = vpop.f32.mrb[0].mxu0
    %v269 = vpop.f32.mrb[0].mxu0
    %v270 = vadd.f32 0.0, %v269
    %v271 = vpop.f32.mrb[0].mxu0
    %272 = vmatprep.mubr.bf16.mxu0 0
    %273 = vmatmul.mubr.bf16.gmra.mrb[0].mxu0 %v129
    %v274 = vpop.f32.mrb[0].mxu0
    %v275 = vadd.f32 0.0, %v274
    %v276 = vpop.f32.mrb[0].mxu0
    %v277 = vpop.f32.mrb[0].mxu0
    %v278 = vadd.f32 0.0, %v277
    %v279 = vpop.f32.mrb[0].mxu0
    %280 = vmatprep.mubr.bf16.mxu0 0
    %281 = vmatmul.mubr.bf16.gmra.mrb[0].mxu0 %v132
    %v282 = vpop.f32.mrb[0].mxu0
    %v283 = vadd.f32 0.0, %v282
    %v284 = vpop.f32.mrb[0].mxu0
    %v285 = vpop.f32.mrb[0].mxu0
    %v286 = vadd.f32 0.0, %v285
    %v287 = vpop.f32.mrb[0].mxu0
    %288 = vmatprep.mubr.bf16.mxu0 0
    %289 = vmatmul.mubr.bf16.gmra.mrb[0].mxu0 %v135
    %v290 = vpop.f32.mrb[0].mxu0
    %v291 = vadd.f32 0.0, %v290
    %v292 = vpop.f32.mrb[0].mxu0
    %v293 = vpop.f32.mrb[0].mxu0
    %v294 = vadd.f32 0.0, %v293
    %v295 = vpop.f32.mrb[0].mxu0
    %296 = vmatprep.mubr.bf16.mxu0 0
    %297 = vmatmul.mubr.bf16.gmra.mrb[0].mxu0 %v138
    %v298 = vpop.f32.mrb[0].mxu0
    %v299 = vadd.f32 0.0, %v298
    %v300 = vpop.f32.mrb[0].mxu0
    %v301 = vpop.f32.mrb[0].mxu0
    %v302 = vadd.f32 0.0, %v301
    %v303 = vpop.f32.mrb[0].mxu0
    %304 = vmatprep.mubr.bf16.mxu0 0
    %305 = vmatmul.mubr.bf16.gmra.mrb[0].mxu0 %v141
    %v306 = vpop.f32.mrb[0].mxu0
    %v307 = vadd.f32 0.0, %v306
    %v308 = vpop.f32.mrb[0].mxu0
    %v309 = vpop.f32.mrb[0].mxu0
    %v310 = vadd.f32 0.0, %v309
    %v311 = vpop.f32.mrb[0].mxu0
    %312 = vmatprep.mubr.bf16.mxu0 0
    %313 = vmatmul.mubr.bf16.gmra.mrb[0].mxu0 %v144
    %v314 = vpop.f32.mrb[0].mxu0
    %v315 = vadd.f32 0.0, %v314
    %v316 = vpop.f32.mrb[0].mxu0
    %v317 = vpop.f32.mrb[0].mxu0
    %v318 = vadd.f32 0.0, %v317
    %v319 = vpop.f32.mrb[0].mxu0
    %320 = vmatprep.mubr.bf16.mxu0 0
    %321 = vmatmul.mubr.bf16.gmra.mrb[0].mxu0 %v147
    %v322 = vpop.f32.mrb[0].mxu0
    %v323 = vadd.f32 0.0, %v322
    %v324 = vpop.f32.mrb[0].mxu0
    %v325 = vpop.f32.mrb[0].mxu0
    %v326 = vadd.f32 0.0, %v325
    %v327 = vpop.f32.mrb[0].mxu0
    %328 = vmatprep.mubr.bf16.mxu0 0
    %329 = vmatmul.mubr.bf16.gmra.mrb[0].mxu0 %v150
    %v330 = vpop.f32.mrb[0].mxu0
    %v331 = vadd.f32 0.0, %v330
    %v332 = vpop.f32.mrb[0].mxu0
    %v333 = vpop.f32.mrb[0].mxu0
    %v334 = vadd.f32 0.0, %v333
    %v335 = vpop.f32.mrb[0].mxu0
    %336 = vmatprep.mubr.bf16.mxu0 0
    %337 = vmatmul.mubr.bf16.gmra.mrb[0].mxu0 %v153
    %v338 = vpop.f32.mrb[0].mxu0
    %v339 = vadd.f32 0.0, %v338
    %v340 = vpop.f32.mrb[0].mxu0
    %v341 = vpop.f32.mrb[0].mxu0
    %v342 = vadd.f32 0.0, %v341
    %v343 = vpop.f32.mrb[0].mxu0
    %344 = vmatprep.mubr.bf16.mxu0 0
    %345 = vmatmul.mubr.bf16.gmra.mrb[0].mxu0 %v156
    %v346 = vpop.f32.mrb[0].mxu0
    %v347 = vadd.f32 0.0, %v346
    %v348 = vpop.f32.mrb[0].mxu0
    %v349 = vpop.f32.mrb[0].mxu0
    %v350 = vadd.f32 0.0, %v349
    %v351 = vpop.f32.mrb[0].mxu0
    %352 = vmatprep.mubr.bf16.mxu0 0
    %353 = vmatmul.mubr.bf16.gmra.mrb[0].mxu0 %v159
    %v354 = vpop.f32.mrb[0].mxu0
    %v355 = vadd.f32 0.0, %v354
    %v356 = vpop.f32.mrb[0].mxu0
    %v357 = vpop.f32.mrb[0].mxu0
    %v358 = vadd.f32 0.0, %v357
    %v359 = vpop.f32.mrb[0].mxu0
    %360 = vmatprep.mubr.bf16.mxu0 0
    %361 = vmatmul.mubr.bf16.gmra.mrb[0].mxu0 %v162
    %v362 = vpop.f32.mrb[0].mxu0
    %v363 = vadd.f32 0.0, %v362
    %v364 = vpop.f32.mrb[0].mxu0
    %v365 = vpop.f32.mrb[0].mxu0
    %v366 = vadd.f32 0.0, %v365
    %v367 = vpop.f32.mrb[0].mxu0
    %368 = vmatprep.mubr.bf16.mxu0 0
    %369 = vmatmul.mubr.bf16.gmra.mrb[0].mxu0 %v165
    %v370 = vpop.f32.mrb[0].mxu0
    %v371 = vadd.f32 0.0, %v370
    %v372 = vpop.f32.mrb[0].mxu0
    %v373 = vpop.f32.mrb[0].mxu0
    %v374 = vadd.f32 0.0, %v373
    %v375 = vpop.f32.mrb[0].mxu0
    %376 = vmatprep.mubr.bf16.mxu0 0
    %377 = vmatmul.mubr.bf16.gmra.mrb[0].mxu0 %v168
    %v378 = vpop.f32.mrb[0].mxu0
    %v379 = vadd.f32 0.0, %v378
    %v380 = vpop.f32.mrb[0].mxu0
    %v381 = vpop.f32.mrb[0].mxu0
    %v382 = vadd.f32 0.0, %v381
    %v383 = vpop.f32.mrb[0].mxu0
    %384 = vmatprep.mubr.bf16.mxu0 0
    %385 = vmatmul.mubr.bf16.gmra.mrb[0].mxu0 %v171
    %v386 = vpop.f32.mrb[0].mxu0
    %v387 = vadd.f32 0.0, %v386
    %v388 = vpop.f32.mrb[0].mxu0
    %v389 = vpop.f32.mrb[0].mxu0
    %v390 = vadd.f32 0.0, %v389
    %v391 = vpop.f32.mrb[0].mxu0
    %392 = vmatprep.mubr.bf16.mxu0 0
    %393 = vmatmul.mubr.bf16.gmra.mrb[0].mxu0 %v174
    %v394 = vpop.f32.mrb[0].mxu0
    %v395 = vadd.f32 0.0, %v394
    %v396 = vpop.f32.mrb[0].mxu0
    %v397 = vpop.f32.mrb[0].mxu0
    %v398 = vadd.f32 0.0, %v397
    %v399 = vpop.f32.mrb[0].mxu0
    %400 = vdwg.mxu0
    %v401 = vpack.c.bf16 %v214, %v211
    %v402 = vpack.c.bf16 %v222, %v219
    %v403 = vpack.c.bf16 %v230, %v227
    %v404 = vpack.c.bf16 %v238, %v235
    %v405 = vpack.c.bf16 %v246, %v243
    %v406 = vpack.c.bf16 %v254, %v251
    %v407 = vpack.c.bf16 %v262, %v259
    %v408 = vpack.c.bf16 %v270, %v267
    %v409 = vpack.c.bf16 %v278, %v275
    %v410 = vpack.c.bf16 %v286, %v283
    %v411 = vpack.c.bf16 %v294, %v291
    %v412 = vpack.c.bf16 %v302, %v299
    %v413 = vpack.c.bf16 %v310, %v307
    %v414 = vpack.c.bf16 %v318, %v315
    %v415 = vpack.c.bf16 %v326, %v323
    %v416 = vpack.c.bf16 %v334, %v331
    %v417 = vpack.c.bf16 %v342, %v339
    %v418 = vpack.c.bf16 %v350, %v347
    %v419 = vpack.c.bf16 %v358, %v355
    %v420 = vpack.c.bf16 %v366, %v363
    %v421 = vpack.c.bf16 %v374, %v371
    %v422 = vpack.c.bf16 %v382, %v379
    %v423 = vpack.c.bf16 %v390, %v387
    %v424 = vpack.c.bf16 %v398, %v395
    %v449 = vunpack.c.l.b16 %v401
    %v450 = vunpack.c.h.b16 %v401
    %v451 = vunpack.c.l.b16 %v402
    %v452 = vunpack.c.h.b16 %v402
    %v453 = vunpack.c.l.b16 %v403
    %v454 = vunpack.c.h.b16 %v403
    %v455 = vunpack.c.l.b16 %v404
    %v456 = vunpack.c.h.b16 %v404
    %v457 = vunpack.c.l.b16 %v405
    %v458 = vunpack.c.h.b16 %v405
    %v459 = vunpack.c.l.b16 %v406
    %v460 = vunpack.c.h.b16 %v406
    %v461 = vunpack.c.l.b16 %v407
    %v462 = vunpack.c.h.b16 %v407
    %v463 = vunpack.c.l.b16 %v408
    %v464 = vunpack.c.h.b16 %v408
    %v465 = vunpack.c.l.b16 %v409
    %v466 = vunpack.c.h.b16 %v409
    %v467 = vunpack.c.l.b16 %v410
    %v468 = vunpack.c.h.b16 %v410
    %v469 = vunpack.c.l.b16 %v411
    %v470 = vunpack.c.h.b16 %v411
    %v471 = vunpack.c.l.b16 %v412
    %v472 = vunpack.c.h.b16 %v412
    %v473 = vunpack.c.l.b16 %v413
    %v474 = vunpack.c.h.b16 %v413
    %v475 = vunpack.c.l.b16 %v414
    %v476 = vunpack.c.h.b16 %v414
    %v477 = vunpack.c.l.b16 %v415
    %v478 = vunpack.c.h.b16 %v415
    %v479 = vunpack.c.l.b16 %v416
    %v480 = vunpack.c.h.b16 %v416
    %v481 = vunpack.c.l.b16 %v417
    %v482 = vunpack.c.h.b16 %v417
    %v483 = vunpack.c.l.b16 %v418
    %v484 = vunpack.c.h.b16 %v418
    %v485 = vunpack.c.l.b16 %v419
    %v486 = vunpack.c.h.b16 %v419
    %v487 = vunpack.c.l.b16 %v420
    %v488 = vunpack.c.h.b16 %v420
    %v489 = vunpack.c.l.b16 %v421
    %v490 = vunpack.c.h.b16 %v421
    %v491 = vunpack.c.l.b16 %v422
    %v492 = vunpack.c.h.b16 %v422
    %v493 = vunpack.c.l.b16 %v423
    %v494 = vunpack.c.h.b16 %v423
    %v495 = vunpack.c.l.b16 %v424
    %v496 = vunpack.c.h.b16 %v424
    %v497 = vpack.c.b16 %v449, %v449
    %v498 = vpack.c.b16 %v450, %v450
    %v499 = vpack.c.b16 %v451, %v451
    %v500 = vpack.c.b16 %v452, %v452
    %v501 = vpack.c.b16 %v453, %v453
    %v502 = vpack.c.b16 %v454, %v454
    %v503 = vpack.c.b16 %v455, %v455
    %v504 = vpack.c.b16 %v456, %v456
    %v505 = vpack.c.b16 %v457, %v457
    %v506 = vpack.c.b16 %v458, %v458
    %v507 = vpack.c.b16 %v459, %v459
    %v508 = vpack.c.b16 %v460, %v460
    %v509 = vpack.c.b16 %v461, %v461
    %v510 = vpack.c.b16 %v462, %v462
    %v511 = vpack.c.b16 %v463, %v463
    %v512 = vpack.c.b16 %v464, %v464
    %v513 = vpack.c.b16 %v465, %v465
    %v514 = vpack.c.b16 %v466, %v466
    %v515 = vpack.c.b16 %v467, %v467
    %v516 = vpack.c.b16 %v468, %v468
    %v517 = vpack.c.b16 %v469, %v469
    %v518 = vpack.c.b16 %v470, %v470
    %v519 = vpack.c.b16 %v471, %v471
    %v520 = vpack.c.b16 %v472, %v472
    %v521 = vpack.c.b16 %v473, %v473
    %v522 = vpack.c.b16 %v474, %v474
    %v523 = vpack.c.b16 %v475, %v475
    %v524 = vpack.c.b16 %v476, %v476
    %v525 = vpack.c.b16 %v477, %v477
    %v526 = vpack.c.b16 %v478, %v478
    %v527 = vpack.c.b16 %v479, %v479
    %v528 = vpack.c.b16 %v480, %v480
    %v529 = vpack.c.b16 %v481, %v481
    %v530 = vpack.c.b16 %v482, %v482
    %v531 = vpack.c.b16 %v483, %v483
    %v532 = vpack.c.b16 %v484, %v484
    %v533 = vpack.c.b16 %v485, %v485
    %v534 = vpack.c.b16 %v486, %v486
    %v535 = vpack.c.b16 %v487, %v487
    %v536 = vpack.c.b16 %v488, %v488
    %v537 = vpack.c.b16 %v489, %v489
    %v538 = vpack.c.b16 %v490, %v490
    %v539 = vpack.c.b16 %v491, %v491
    %v540 = vpack.c.b16 %v492, %v492
    %v541 = vpack.c.b16 %v493, %v493
    %v542 = vpack.c.b16 %v494, %v494
    %v543 = vpack.c.b16 %v495, %v495
    %v544 = vpack.c.b16 %v496, %v496
    %593 = vst [vmem:[#allocation2] sm:$0xf] %v497
    %594 = vst [vmem:[#allocation2 + $0x4] sm:$0xf] %v498
    %595 = vst [vmem:[#allocation2 + $0x8] sm:$0xf] %v499
    %596 = vst [vmem:[#allocation2 + $0xc] sm:$0xf] %v500
    %597 = vst [vmem:[#allocation2 + $0x10] sm:$0xf] %v501
    %598 = vst [vmem:[#allocation2 + $0x14] sm:$0xf] %v502
    %599 = vst [vmem:[#allocation2 + $0x18] sm:$0xf] %v503
    %600 = vst [vmem:[#allocation2 + $0x1c] sm:$0xf] %v504
    %601 = vst [vmem:[#allocation2 + $0x20] sm:$0xf] %v505
    %602 = vst [vmem:[#allocation2 + $0x24] sm:$0xf] %v506
    %603 = vst [vmem:[#allocation2 + $0x28] sm:$0xf] %v507
    %604 = vst [vmem:[#allocation2 + $0x2c] sm:$0xf] %v508
    %605 = vst [vmem:[#allocation2 + $0x30] sm:$0xf] %v509
    %606 = vst [vmem:[#allocation2 + $0x34] sm:$0xf] %v510
    %607 = vst [vmem:[#allocation2 + $0x38] sm:$0xf] %v511
    %608 = vst [vmem:[#allocation2 + $0x3c] sm:$0xf] %v512
    %609 = vst [vmem:[#allocation2 + $0x40] sm:$0xf] %v513
    %610 = vst [vmem:[#allocation2 + $0x44] sm:$0xf] %v514
    %611 = vst [vmem:[#allocation2 + $0x48] sm:$0xf] %v515
    %612 = vst [vmem:[#allocation2 + $0x4c] sm:$0xf] %v516
    %613 = vst [vmem:[#allocation2 + $0x50] sm:$0xf] %v517
    %614 = vst [vmem:[#allocation2 + $0x54] sm:$0xf] %v518
    %615 = vst [vmem:[#allocation2 + $0x58] sm:$0xf] %v519
    %616 = vst [vmem:[#allocation2 + $0x5c] sm:$0xf] %v520
    %617 = vst [vmem:[#allocation2 + $0x60] sm:$0xf] %v521
    %618 = vst [vmem:[#allocation2 + $0x64] sm:$0xf] %v522
    %619 = vst [vmem:[#allocation2 + $0x68] sm:$0xf] %v523
    %620 = vst [vmem:[#allocation2 + $0x6c] sm:$0xf] %v524
    %621 = vst [vmem:[#allocation2 + $0x70] sm:$0xf] %v525
    %622 = vst [vmem:[#allocation2 + $0x74] sm:$0xf] %v526
    %623 = vst [vmem:[#allocation2 + $0x78] sm:$0xf] %v527
    %624 = vst [vmem:[#allocation2 + $0x7c] sm:$0xf] %v528
    %625 = vst [vmem:[#allocation2 + $0x80] sm:$0xf] %v529
    %626 = vst [vmem:[#allocation2 + $0x84] sm:$0xf] %v530
    %627 = vst [vmem:[#allocation2 + $0x88] sm:$0xf] %v531
    %628 = vst [vmem:[#allocation2 + $0x8c] sm:$0xf] %v532
    %629 = vst [vmem:[#allocation2 + $0x90] sm:$0xf] %v533
    %630 = vst [vmem:[#allocation2 + $0x94] sm:$0xf] %v534
    %631 = vst [vmem:[#allocation2 + $0x98] sm:$0xf] %v535
    %632 = vst [vmem:[#allocation2 + $0x9c] sm:$0xf] %v536
    %633 = vst [vmem:[#allocation2 + $0xa0] sm:$0xf] %v537
    %634 = vst [vmem:[#allocation2 + $0xa4] sm:$0xf] %v538
    %635 = vst [vmem:[#allocation2 + $0xa8] sm:$0xf] %v539
    %636 = vst [vmem:[#allocation2 + $0xac] sm:$0xf] %v540
    %637 = vst [vmem:[#allocation2 + $0xb0] sm:$0xf] %v541
    %638 = vst [vmem:[#allocation2 + $0xb4] sm:$0xf] %v542
    %639 = vst [vmem:[#allocation2 + $0xb8] sm:$0xf] %v543
    %640 = vst [vmem:[#allocation2 + $0xbc] sm:$0xf] %v544
    %v641 = vld [vmem:[%s2] sm:$0xff]
    %v642 = vld [vmem:[%s2 + $0x8] sm:$0xff]
    %v643 = vld [vmem:[%s2 + $0x10] sm:$0xff]
    %v644 = vld [vmem:[%s2 + $0x18] sm:$0xff]
    %v645 = vld [vmem:[%s2 + $0x20] sm:$0xff]
    %v646 = vld [vmem:[%s2 + $0x28] sm:$0xff]
    %v647 = vld [vmem:[%s2 + $0x30] sm:$0xff]
    %v648 = vld [vmem:[%s2 + $0x38] sm:$0xff]
    %v649 = vld [vmem:[%s2 + $0x40] sm:$0xff]
    %v650 = vld [vmem:[%s2 + $0x48] sm:$0xff]
    %v651 = vld [vmem:[%s2 + $0x50] sm:$0xff]
    %v652 = vld [vmem:[%s2 + $0x58] sm:$0xff]
    %v653 = vld [vmem:[%s2 + $0x60] sm:$0xff]
    %v654 = vld [vmem:[%s2 + $0x68] sm:$0xff]
    %v655 = vld [vmem:[%s2 + $0x70] sm:$0xff]
    %v656 = vld [vmem:[%s2 + $0x78] sm:$0xff]
    %v657 = vpack.c.bf16 %v642, %v641
    %v658 = vpack.c.bf16 %v644, %v643
    %v659 = vpack.c.bf16 %v646, %v645
    %v660 = vpack.c.bf16 %v648, %v647
    %v661 = vpack.c.bf16 %v650, %v649
    %v662 = vpack.c.bf16 %v652, %v651
    %v663 = vpack.c.bf16 %v654, %v653
    %v664 = vpack.c.bf16 %v656, %v655
    %665 = vmatprep.subr.bf16.mxu0 0
    %666 = vmatpush1.bf16.msra.mxu0 %v657
    %667 = vmatprep.subr.bf16.mxu0 0
    %668 = vmatpush1.bf16.msra.mxu0 %v658
    %669 = vmatprep.subr.bf16.mxu0 0
    %670 = vmatpush1.bf16.msra.mxu0 %v659
    %671 = vmatprep.subr.bf16.mxu0 0
    %672 = vmatpush1.bf16.msra.mxu0 %v660
    %673 = vmatprep.subr.bf16.mxu0 0
    %674 = vmatpush1.bf16.msra.mxu0 %v661
    %675 = vmatprep.subr.bf16.mxu0 0
    %676 = vmatpush1.bf16.msra.mxu0 %v662
    %677 = vmatprep.subr.bf16.mxu0 0
    %678 = vmatpush1.bf16.msra.mxu0 %v663
    %679 = vmatprep.subr.bf16.mxu0 0
    %680 = vmatpush1.bf16.msra.mxu0 %v664
    %681 = vmatprep.subr.bf16.mxu0 0
    %682 = vmatpush1.bf16.msra.mxu0 0
    %683 = vmatprep.subr.bf16.mxu0 0
    %684 = vmatpush1.bf16.msra.mxu0 0
    %685 = vmatprep.subr.bf16.mxu0 0
    %686 = vmatpush1.bf16.msra.mxu0 0
    %687 = vmatprep.subr.bf16.mxu0 0
    %688 = vmatpush1.bf16.msra.mxu0 0
    %689 = vmatprep.subr.bf16.mxu0 0
    %690 = vmatpush1.bf16.msra.mxu0 0
    %691 = vmatprep.subr.bf16.mxu0 0
    %692 = vmatpush1.bf16.msra.mxu0 0
    %693 = vmatprep.subr.bf16.mxu0 0
    %694 = vmatpush1.bf16.msra.mxu0 0
    %695 = vmatprep.subr.bf16.mxu0 0
    %696 = vmatpush1.bf16.msra.mxu0 0
    %697 = vmatprep.mubr.bf16.mxu0 0
    %698 = vmatmul.mubr.bf16.gmra.mrb[0].mxu0 %v401
    %v699 = vpop.f32.mrb[0].mxu0
    %v700 = vadd.f32 0.0, %v699
    %v701 = vpop.f32.mrb[0].mxu0
    %v702 = vpop.f32.mrb[0].mxu0
    %v703 = vadd.f32 0.0, %v702
    %v704 = vpop.f32.mrb[0].mxu0
    %705 = vmatprep.mubr.bf16.mxu0 0
    %706 = vmatmul.mubr.bf16.gmra.mrb[0].mxu0 %v402
    %v707 = vpop.f32.mrb[0].mxu0
    %v708 = vadd.f32 0.0, %v707
    %v709 = vpop.f32.mrb[0].mxu0
    %v710 = vpop.f32.mrb[0].mxu0
    %v711 = vadd.f32 0.0, %v710
    %v712 = vpop.f32.mrb[0].mxu0
    %713 = vmatprep.mubr.bf16.mxu0 0
    %714 = vmatmul.mubr.bf16.gmra.mrb[0].mxu0 %v403
    %v715 = vpop.f32.mrb[0].mxu0
    %v716 = vadd.f32 0.0, %v715
    %v717 = vpop.f32.mrb[0].mxu0
    %v718 = vpop.f32.mrb[0].mxu0
    %v719 = vadd.f32 0.0, %v718
    %v720 = vpop.f32.mrb[0].mxu0
    %721 = vmatprep.mubr.bf16.mxu0 0
    %722 = vmatmul.mubr.bf16.gmra.mrb[0].mxu0 %v404
    %v723 = vpop.f32.mrb[0].mxu0
    %v724 = vadd.f32 0.0, %v723
    %v725 = vpop.f32.mrb[0].mxu0
    %v726 = vpop.f32.mrb[0].mxu0
    %v727 = vadd.f32 0.0, %v726
    %v728 = vpop.f32.mrb[0].mxu0
    %729 = vmatprep.mubr.bf16.mxu0 0
    %730 = vmatmul.mubr.bf16.gmra.mrb[0].mxu0 %v405
    %v731 = vpop.f32.mrb[0].mxu0
    %v732 = vadd.f32 0.0, %v731
    %v733 = vpop.f32.mrb[0].mxu0
    %v734 = vpop.f32.mrb[0].mxu0
    %v735 = vadd.f32 0.0, %v734
    %v736 = vpop.f32.mrb[0].mxu0
    %737 = vmatprep.mubr.bf16.mxu0 0
    %738 = vmatmul.mubr.bf16.gmra.mrb[0].mxu0 %v406
    %v739 = vpop.f32.mrb[0].mxu0
    %v740 = vadd.f32 0.0, %v739
    %v741 = vpop.f32.mrb[0].mxu0
    %v742 = vpop.f32.mrb[0].mxu0
    %v743 = vadd.f32 0.0, %v742
    %v744 = vpop.f32.mrb[0].mxu0
    %745 = vmatprep.mubr.bf16.mxu0 0
    %746 = vmatmul.mubr.bf16.gmra.mrb[0].mxu0 %v407
    %v747 = vpop.f32.mrb[0].mxu0
    %v748 = vadd.f32 0.0, %v747
    %v749 = vpop.f32.mrb[0].mxu0
    %v750 = vpop.f32.mrb[0].mxu0
    %v751 = vadd.f32 0.0, %v750
    %v752 = vpop.f32.mrb[0].mxu0
    %753 = vmatprep.mubr.bf16.mxu0 0
    %754 = vmatmul.mubr.bf16.gmra.mrb[0].mxu0 %v408
    %v755 = vpop.f32.mrb[0].mxu0
    %v756 = vadd.f32 0.0, %v755
    %v757 = vpop.f32.mrb[0].mxu0
    %v758 = vpop.f32.mrb[0].mxu0
    %v759 = vadd.f32 0.0, %v758
    %v760 = vpop.f32.mrb[0].mxu0
    %761 = vmatprep.mubr.bf16.mxu0 0
    %762 = vmatmul.mubr.bf16.gmra.mrb[0].mxu0 %v409
    %v763 = vpop.f32.mrb[0].mxu0
    %v764 = vadd.f32 0.0, %v763
    %v765 = vpop.f32.mrb[0].mxu0
    %v766 = vpop.f32.mrb[0].mxu0
    %v767 = vadd.f32 0.0, %v766
    %v768 = vpop.f32.mrb[0].mxu0
    %769 = vmatprep.mubr.bf16.mxu0 0
    %770 = vmatmul.mubr.bf16.gmra.mrb[0].mxu0 %v410
    %v771 = vpop.f32.mrb[0].mxu0
    %v772 = vadd.f32 0.0, %v771
    %v773 = vpop.f32.mrb[0].mxu0
    %v774 = vpop.f32.mrb[0].mxu0
    %v775 = vadd.f32 0.0, %v774
    %v776 = vpop.f32.mrb[0].mxu0
    %777 = vmatprep.mubr.bf16.mxu0 0
    %778 = vmatmul.mubr.bf16.gmra.mrb[0].mxu0 %v411
    %v779 = vpop.f32.mrb[0].mxu0
    %v780 = vadd.f32 0.0, %v779
    %v781 = vpop.f32.mrb[0].mxu0
    %v782 = vpop.f32.mrb[0].mxu0
    %v783 = vadd.f32 0.0, %v782
    %v784 = vpop.f32.mrb[0].mxu0
    %785 = vmatprep.mubr.bf16.mxu0 0
    %786 = vmatmul.mubr.bf16.gmra.mrb[0].mxu0 %v412
    %v787 = vpop.f32.mrb[0].mxu0
    %v788 = vadd.f32 0.0, %v787
    %v789 = vpop.f32.mrb[0].mxu0
    %v790 = vpop.f32.mrb[0].mxu0
    %v791 = vadd.f32 0.0, %v790
    %v792 = vpop.f32.mrb[0].mxu0
    %793 = vmatprep.mubr.bf16.mxu0 0
    %794 = vmatmul.mubr.bf16.gmra.mrb[0].mxu0 %v413
    %v795 = vpop.f32.mrb[0].mxu0
    %v796 = vadd.f32 0.0, %v795
    %v797 = vpop.f32.mrb[0].mxu0
    %v798 = vpop.f32.mrb[0].mxu0
    %v799 = vadd.f32 0.0, %v798
    %v800 = vpop.f32.mrb[0].mxu0
    %801 = vmatprep.mubr.bf16.mxu0 0
    %802 = vmatmul.mubr.bf16.gmra.mrb[0].mxu0 %v414
    %v803 = vpop.f32.mrb[0].mxu0
    %v804 = vadd.f32 0.0, %v803
    %v805 = vpop.f32.mrb[0].mxu0
    %v806 = vpop.f32.mrb[0].mxu0
    %v807 = vadd.f32 0.0, %v806
    %v808 = vpop.f32.mrb[0].mxu0
    %809 = vmatprep.mubr.bf16.mxu0 0
    %810 = vmatmul.mubr.bf16.gmra.mrb[0].mxu0 %v415
    %v811 = vpop.f32.mrb[0].mxu0
    %v812 = vadd.f32 0.0, %v811
    %v813 = vpop.f32.mrb[0].mxu0
    %v814 = vpop.f32.mrb[0].mxu0
    %v815 = vadd.f32 0.0, %v814
    %v816 = vpop.f32.mrb[0].mxu0
    %817 = vmatprep.mubr.bf16.mxu0 0
    %818 = vmatmul.mubr.bf16.gmra.mrb[0].mxu0 %v416
    %v819 = vpop.f32.mrb[0].mxu0
    %v820 = vadd.f32 0.0, %v819
    %v821 = vpop.f32.mrb[0].mxu0
    %v822 = vpop.f32.mrb[0].mxu0
    %v823 = vadd.f32 0.0, %v822
    %v824 = vpop.f32.mrb[0].mxu0
    %825 = vmatprep.mubr.bf16.mxu0 0
    %826 = vmatmul.mubr.bf16.gmra.mrb[0].mxu0 %v417
    %v827 = vpop.f32.mrb[0].mxu0
    %v828 = vadd.f32 0.0, %v827
    %v829 = vpop.f32.mrb[0].mxu0
    %v830 = vpop.f32.mrb[0].mxu0
    %v831 = vadd.f32 0.0, %v830
    %v832 = vpop.f32.mrb[0].mxu0
    %833 = vmatprep.mubr.bf16.mxu0 0
    %834 = vmatmul.mubr.bf16.gmra.mrb[0].mxu0 %v418
    %v835 = vpop.f32.mrb[0].mxu0
    %v836 = vadd.f32 0.0, %v835
    %v837 = vpop.f32.mrb[0].mxu0
    %v838 = vpop.f32.mrb[0].mxu0
    %v839 = vadd.f32 0.0, %v838
    %v840 = vpop.f32.mrb[0].mxu0
    %841 = vmatprep.mubr.bf16.mxu0 0
    %842 = vmatmul.mubr.bf16.gmra.mrb[0].mxu0 %v419
    %v843 = vpop.f32.mrb[0].mxu0
    %v844 = vadd.f32 0.0, %v843
    %v845 = vpop.f32.mrb[0].mxu0
    %v846 = vpop.f32.mrb[0].mxu0
    %v847 = vadd.f32 0.0, %v846
    %v848 = vpop.f32.mrb[0].mxu0
    %849 = vmatprep.mubr.bf16.mxu0 0
    %850 = vmatmul.mubr.bf16.gmra.mrb[0].mxu0 %v420
    %v851 = vpop.f32.mrb[0].mxu0
    %v852 = vadd.f32 0.0, %v851
    %v853 = vpop.f32.mrb[0].mxu0
    %v854 = vpop.f32.mrb[0].mxu0
    %v855 = vadd.f32 0.0, %v854
    %v856 = vpop.f32.mrb[0].mxu0
    %857 = vmatprep.mubr.bf16.mxu0 0
    %858 = vmatmul.mubr.bf16.gmra.mrb[0].mxu0 %v421
    %v859 = vpop.f32.mrb[0].mxu0
    %v860 = vadd.f32 0.0, %v859
    %v861 = vpop.f32.mrb[0].mxu0
    %v862 = vpop.f32.mrb[0].mxu0
    %v863 = vadd.f32 0.0, %v862
    %v864 = vpop.f32.mrb[0].mxu0
    %865 = vmatprep.mubr.bf16.mxu0 0
    %866 = vmatmul.mubr.bf16.gmra.mrb[0].mxu0 %v422
    %v867 = vpop.f32.mrb[0].mxu0
    %v868 = vadd.f32 0.0, %v867
    %v869 = vpop.f32.mrb[0].mxu0
    %v870 = vpop.f32.mrb[0].mxu0
    %v871 = vadd.f32 0.0, %v870
    %v872 = vpop.f32.mrb[0].mxu0
    %873 = vmatprep.mubr.bf16.mxu0 0
    %874 = vmatmul.mubr.bf16.gmra.mrb[0].mxu0 %v423
    %v875 = vpop.f32.mrb[0].mxu0
    %v876 = vadd.f32 0.0, %v875
    %v877 = vpop.f32.mrb[0].mxu0
    %v878 = vpop.f32.mrb[0].mxu0
    %v879 = vadd.f32 0.0, %v878
    %v880 = vpop.f32.mrb[0].mxu0
    %881 = vmatprep.mubr.bf16.mxu0 0
    %882 = vmatmul.mubr.bf16.gmra.mrb[0].mxu0 %v424
    %v883 = vpop.f32.mrb[0].mxu0
    %v884 = vadd.f32 0.0, %v883
    %v885 = vpop.f32.mrb[0].mxu0
    %v886 = vpop.f32.mrb[0].mxu0
    %v887 = vadd.f32 0.0, %v886
    %v888 = vpop.f32.mrb[0].mxu0
    %889 = vdwg.mxu0
    %890 = vst [vmem:[#allocation4] sm:$0xff] %v700
    %891 = vst [vmem:[#allocation4 + $0x8] sm:$0xff] %v703
    %892 = vst [vmem:[#allocation4 + $0x10] sm:$0xff] %v708
    %893 = vst [vmem:[#allocation4 + $0x18] sm:$0xff] %v711
    %894 = vst [vmem:[#allocation4 + $0x20] sm:$0xff] %v716
    %895 = vst [vmem:[#allocation4 + $0x28] sm:$0xff] %v719
    %896 = vst [vmem:[#allocation4 + $0x30] sm:$0xff] %v724
    %897 = vst [vmem:[#allocation4 + $0x38] sm:$0xff] %v727
    %898 = vst [vmem:[#allocation4 + $0x40] sm:$0xff] %v732
    %899 = vst [vmem:[#allocation4 + $0x48] sm:$0xff] %v735
    %900 = vst [vmem:[#allocation4 + $0x50] sm:$0xff] %v740
    %901 = vst [vmem:[#allocation4 + $0x58] sm:$0xff] %v743
    %902 = vst [vmem:[#allocation4 + $0x60] sm:$0xff] %v748
    %903 = vst [vmem:[#allocation4 + $0x68] sm:$0xff] %v751
    %904 = vst [vmem:[#allocation4 + $0x70] sm:$0xff] %v756
    %905 = vst [vmem:[#allocation4 + $0x78] sm:$0xff] %v759
    %906 = vst [vmem:[#allocation4 + $0x80] sm:$0xff] %v764
    %907 = vst [vmem:[#allocation4 + $0x88] sm:$0xff] %v767
    %908 = vst [vmem:[#allocation4 + $0x90] sm:$0xff] %v772
    %909 = vst [vmem:[#allocation4 + $0x98] sm:$0xff] %v775
    %910 = vst [vmem:[#allocation4 + $0xa0] sm:$0xff] %v780
    %911 = vst [vmem:[#allocation4 + $0xa8] sm:$0xff] %v783
    %912 = vst [vmem:[#allocation4 + $0xb0] sm:$0xff] %v788
    %913 = vst [vmem:[#allocation4 + $0xb8] sm:$0xff] %v791
    %914 = vst [vmem:[#allocation4 + $0xc0] sm:$0xff] %v796
    %915 = vst [vmem:[#allocation4 + $0xc8] sm:$0xff] %v799
    %916 = vst [vmem:[#allocation4 + $0xd0] sm:$0xff] %v804
    %917 = vst [vmem:[#allocation4 + $0xd8] sm:$0xff] %v807
    %918 = vst [vmem:[#allocation4 + $0xe0] sm:$0xff] %v812
    %919 = vst [vmem:[#allocation4 + $0xe8] sm:$0xff] %v815
    %920 = vst [vmem:[#allocation4 + $0xf0] sm:$0xff] %v820
    %921 = vst [vmem:[#allocation4 + $0xf8] sm:$0xff] %v823
    %922 = vst [vmem:[#allocation4 + $0x100] sm:$0xff] %v828
    %923 = vst [vmem:[#allocation4 + $0x108] sm:$0xff] %v831
    %924 = vst [vmem:[#allocation4 + $0x110] sm:$0xff] %v836
    %925 = vst [vmem:[#allocation4 + $0x118] sm:$0xff] %v839
    %926 = vst [vmem:[#allocation4 + $0x120] sm:$0xff] %v844
    %927 = vst [vmem:[#allocation4 + $0x128] sm:$0xff] %v847
    %928 = vst [vmem:[#allocation4 + $0x130] sm:$0xff] %v852
    %929 = vst [vmem:[#allocation4 + $0x138] sm:$0xff] %v855
    %930 = vst [vmem:[#allocation4 + $0x140] sm:$0xff] %v860
    %931 = vst [vmem:[#allocation4 + $0x148] sm:$0xff] %v863
    %932 = vst [vmem:[#allocation4 + $0x150] sm:$0xff] %v868
    %933 = vst [vmem:[#allocation4 + $0x158] sm:$0xff] %v871
    %934 = vst [vmem:[#allocation4 + $0x160] sm:$0xff] %v876
    %935 = vst [vmem:[#allocation4 + $0x168] sm:$0xff] %v879
    %936 = vst [vmem:[#allocation4 + $0x170] sm:$0xff] %v884
    %937 = vst [vmem:[#allocation4 + $0x178] sm:$0xff] %v887
    // Predicated region
    $region14: #{tpu_custom_call.1} parent=1 // pred_check
      _
    $region15: #{tpu_custom_call.1} parent=1 // pred_check_branch
      %939 = sbr.rel (0) target = $region17
    $region16: #{tpu_custom_call.1} parent=1 // pred_region
      %s941 = ssub.s32 3072, 3072
      %942 = vsyncadd [#allocation3], %s941
      %s943 = sshll.u32 [#allocation2], 4
      %s944 = int_to_ptr.vmem [resolvable:$true] %s943
      %949 = dma.vmem_to_hbm [thread:$0]  %s944, 3072, %s3, [#allocation3], 64, 64, 4
    $region17: #{tpu_custom_call.1} parent=1 // pred_fallthru
      _
    // Predicated region
    $region18: #{tpu_custom_call.1} parent=1 // pred_check
      _
    $region19: #{tpu_custom_call.1} parent=1 // pred_check_branch
      %951 = sbr.rel (0) target = $region21
    $region20: #{tpu_custom_call.1} parent=1 // pred_region
      %s953 = ssub.s32 6144, 6144
      %954 = vsyncadd [#allocation5], %s953
      %s955 = sshll.u32 [#allocation4], 4
      %s956 = int_to_ptr.vmem [resolvable:$true] %s955
      %961 = dma.vmem_to_hbm [thread:$0]  %s956, 6144, %s4, [#allocation5], 128, 128, 8
    $region21: #{tpu_custom_call.1} parent=1 // pred_fallthru
      _
    // Predicated region
    $region22: #{tpu_custom_call.1} parent=1 // pred_check
      _
    $region23: #{tpu_custom_call.1} parent=1 // pred_check_branch
      %963 = sbr.rel (0) target = $region25
    $region24: #{tpu_custom_call.1} parent=1 // pred_region
      %964 = dma.done [#allocation3], 3072
    $region25: #{tpu_custom_call.1} parent=1 // pred_fallthru
      _
    // Predicated region
    $region26: #{tpu_custom_call.1} parent=1 // pred_check
      _
    $region27: #{tpu_custom_call.1} parent=1 // pred_check_branch
      %966 = sbr.rel (0) target = $region29
    $region28: #{tpu_custom_call.1} parent=1 // pred_region
      %967 = dma.done [#allocation5], 6144
    $region29: #{tpu_custom_call.1} parent=1 // pred_fallthru
      _
    %968 = vsyncpa [#allocation3], 1
    %969 = vsyncpa [#allocation5], 1

</llo_original>
